<compile_context>
chip_gen: v5e
topology: v5e:2x2
jax: 0.10.0
libtpu: 0.0.40
codegen_flags: <defaults>
</compile_context>

<pallas_src>
import jax
import jax.numpy as jnp
from jax.experimental import pallas as pl
from jax.experimental.pallas import tpu as pltpu

HIDDEN = 100
BOTTLE = 3
LANE = 128       # TPU lane width
SUBLANE = 8      # TPU sublane width


def _cdiv(a, b):
    return -(-a // b)


def _round_up(n, m):
    return _cdiv(n, m) * m


def _pad2(a, rows, cols):
    r, c = a.shape
    return jnp.pad(a, ((0, rows - r), (0, cols - c)))


def mlp_kernel(x_ref, w1_ref, wstack_ref, bstack_ref, y_ref):
    """x:(tile_b,in)  w1:(in,128)  wstack:(3,128,128)=[w2,wb,w3]  bstack:(4,128).

    All hidden lane-dims are zero-padded to 128 so every matmul is a full-width
    MXU tile; zero-padded weight cols + zero-padded biases keep the pad exactly
    zero through ReLU, so nothing leaks into the next layer.
    """
    out_dim = y_ref.shape[-1]
    wdt = w1_ref.dtype                      # f32 or bf16 resident weights
    x = x_ref[...]

    # fc1 + ReLU
    h = jnp.dot(x.astype(wdt), w1_ref[...], preferred_element_type=jnp.float32)
    h = jnp.maximum(h + bstack_ref[0:1, :], 0.0)
    # fc2 + ReLU
    h = jnp.dot(h.astype(wdt), wstack_ref[0], preferred_element_type=jnp.float32)
    h = jnp.maximum(h + bstack_ref[1:2, :], 0.0)
    # bottle + ReLU
    h = jnp.dot(h.astype(wdt), wstack_ref[1], preferred_element_type=jnp.float32)
    h = jnp.maximum(h + bstack_ref[2:3, :], 0.0)
    # fc3 (no activation).  Only the real out_size lanes are stored: masked
    # store, but HBM writeback drops 32x vs a 128-wide padded slab.
    y = jnp.dot(h.astype(wdt), wstack_ref[2], preferred_element_type=jnp.float32)
    y_ref[...] = (y + bstack_ref[3:4, :])[:, :out_dim]


def prepare_padded_params(params, *, weight_dtype=jnp.float32):
    """One-time padding/packing of the (in,out)-layout params (hoisted out of
    the per-call path).  Returns:
      w1      : (in_size, 128)   weight_dtype
      w_stack : (3, 128, 128)    weight_dtype   [w2, wb, w3] zero-padded
      b_stack : (4, 128)         float32        [b1, b2, bb, b3] zero-padded
    Use weight_dtype=jnp.bfloat16 on v6e/v7x to halve resident-weight DMA.
    """
    in_size = params["w1"].shape[0]
    out_size = params["w3"].shape[1]
    assert HIDDEN <= LANE and BOTTLE <= LANE and out_size <= LANE

    w1p = _pad2(params["w1"], in_size, LANE).astype(weight_dtype)
    w_stack = jnp.stack(
        [_pad2(params["w2"], LANE, LANE),
         _pad2(params["wb"], LANE, LANE),
         _pad2(params["w3"], LANE, LANE)], axis=0).astype(weight_dtype)
    b_stack = jnp.concatenate(
        [_pad2(params["b1"], 1, LANE), _pad2(params["b2"], 1, LANE),
         _pad2(params["bb"], 1, LANE), _pad2(params["b3"], 1, LANE)],
        axis=0).astype(jnp.float32)

    return dict(w1=w1p, w_stack=w_stack, b_stack=b_stack,
                in_size=in_size, out_size=out_size)


def _choose_tiles(batch, max_tile):
    """Waste-aware batch tiling: tile is a multiple of 8 (not a fixed 256), at
    most `max_tile`, and we force >=2 grid steps whenever there is enough work
    so the "parallel" grid axis can shard across v7x's two TensorCores."""
    b8 = _round_up(max(batch, 1), SUBLANE)
    n_tiles = _cdiv(b8, max_tile)
    if n_tiles == 1 and b8 >= 2 * SUBLANE:
        n_tiles = 2
    tile_b = _round_up(_cdiv(b8, n_tiles), SUBLANE)   # <=7 padded rows per tile
    return tile_b, n_tiles


def neural_network_forward(x, padded_params, *, max_tile=1024):
    """x: (B, in_size) f32; padded_params from prepare_padded_params()."""
    B, in_size = x.shape
    pp = padded_params
    assert in_size == pp["in_size"]
    out_size = pp["out_size"]

    tile_b, n_tiles = _choose_tiles(B, max_tile)
    b_pad = tile_b * n_tiles
    if b_pad != B:
        # Pad batch rows only; the feature dim (K) is deliberately NOT padded.
        x = jnp.pad(x, ((0, b_pad - B), (0, 0)))

    w_bytes = ((pp["w1"].size + pp["w_stack"].size) * pp["w1"].dtype.itemsize
               + pp["b_stack"].size * 4)
    cost = pl.CostEstimate(
        flops=2 * b_pad * (in_size * HIDDEN + HIDDEN * HIDDEN
                           + HIDDEN * BOTTLE + BOTTLE * out_size),
        transcendentals=0,
        bytes_accessed=b_pad * (in_size + out_size) * 4 + w_bytes,
    )

    resident = lambda shape: pl.BlockSpec(shape, lambda i: (0,) * len(shape))

    y = pl.pallas_call(
        mlp_kernel,
        out_shape=jax.ShapeDtypeStruct((b_pad, out_size), jnp.float32),
        grid_spec=pl.GridSpec(
            grid=(n_tiles,),
            in_specs=[
                pl.BlockSpec((tile_b, in_size), lambda i: (i, 0)),   # x tile
                resident(pp["w1"].shape),        # (in, 128) weights (resident)
                resident(pp["w_stack"].shape),   # (3, 128, 128) weight slab
                resident(pp["b_stack"].shape),   # (4, 128) bias slab
            ],
            # Narrow (tile_b, out_size) output block: legal (equals the full
            # last dim) and avoids the 32x padded writeback + wrapper slice.
            out_specs=pl.BlockSpec((tile_b, out_size), lambda i: (i, 0)),
        ),
        compiler_params=pltpu.CompilerParams(
            dimension_semantics=("parallel",),
            # Covers v5e's 16 MiB scoped-VMEM default if tiles are grown.
            vmem_limit_bytes=32 * 1024 * 1024,
        ),
        cost_estimate=cost,
    )(x, pp["w1"], pp["w_stack"], pp["b_stack"])

    return y if b_pad == B else y[:B]


def init_params(key, input_size, output_size):
    """PyTorch-style uniform(-1/sqrt(fan_in), 1/sqrt(fan_in)) init; weights
    stored transposed as (in, out), biases as (1, out)."""
    def linear(key, fan_in, fan_out):
        kw, kb = jax.random.split(key)
        bound = 1.0 / (fan_in ** 0.5)
        w = jax.random.uniform(kw, (fan_in, fan_out), jnp.float32, -bound, bound)
        b = jax.random.uniform(kb, (1, fan_out), jnp.float32, -bound, bound)
        return w, b

    k1, k2, kb, k3 = jax.random.split(key, 4)
    w1, b1 = linear(k1, input_size, HIDDEN)
    w2, b2 = linear(k2, HIDDEN, HIDDEN)
    wb, bb = linear(kb, HIDDEN, BOTTLE)
    w3, b3 = linear(k3, BOTTLE, output_size)
    return dict(w1=w1, b1=b1, w2=w2, b2=b2, wb=wb, bb=bb, w3=w3, b3=b3)


def reference_forward(x, p):
    h1 = jnp.maximum(x @ p["w1"] + p["b1"], 0.0)
    h2 = jnp.maximum(h1 @ p["w2"] + p["b2"], 0.0)
    hb = jnp.maximum(h2 @ p["wb"] + p["bb"], 0.0)
    return hb @ p["w3"] + p["b3"]


if __name__ == "__main__":
    input_size = 32
    output_size = 4

    key = jax.random.PRNGKey(0)
    kx, kp = jax.random.split(key)
    params = init_params(kp, input_size, output_size)
    padded = prepare_padded_params(params)          # one-time pad/pack (hoisted)

    # Small-batch latency case (grid=(1,), no batch padding, no output slice).
    x = jax.random.normal(kx, (8, input_size), jnp.float32)
    y = jax.block_until_ready(neural_network_forward(x, padded))
    y_ref = reference_forward(x, params)
    assert y.shape == (8, output_size)
    assert jnp.allclose(y, y_ref, atol=1e-4, rtol=1e-4)

    # Non-aligned larger batch: waste-aware tiling -> 2 grid steps of 136 rows
    # (vs. 512 padded rows previously), exercising megacore-friendly sharding.
    x2 = jax.random.normal(jax.random.PRNGKey(1), (260, input_size), jnp.float32)
    y2 = jax.block_until_ready(neural_network_forward(x2, padded))
    assert y2.shape == (260, output_size)
    assert jnp.allclose(y2, reference_forward(x2, params), atol=1e-4, rtol=1e-4)

    # bf16 resident weights (v6e/v7x fast path); f32 accumulate + f32 bias/ReLU.
    padded_bf16 = prepare_padded_params(params, weight_dtype=jnp.bfloat16)
    y3 = jax.block_until_ready(neural_network_forward(x2, padded_bf16))
    assert y3.shape == (260, output_size)
    assert jnp.allclose(y3, reference_forward(x2, params), atol=5e-2, rtol=5e-2)

    print("KERNEL_OK")
</pallas_src>

<mosaic_0001>
module attributes {stable_mosaic.version = 11 : i64} {
  func.func @mlp_kernel(%arg0: i32, %arg1: memref<8x32xf32, #tpu.memory_space<vmem>>, %arg2: memref<32x128xf32, #tpu.memory_space<vmem>>, %arg3: memref<3x128x128xf32, #tpu.memory_space<vmem>>, %arg4: memref<4x128xf32, #tpu.memory_space<vmem>>, %arg5: memref<8x4xf32, #tpu.memory_space<vmem>>) attributes {dimension_semantics = [#tpu.dimension_semantics<parallel>], iteration_bounds = array<i64: 1>, scalar_prefetch = 0 : i64, scratch_operands = 0 : i64, tpu.core_type = #tpu.core_type<tc>, window_params = [{transform_indices = @transform_0, window_bounds = array<i64: 8, 32>}, {pipeline_mode = #tpu.pipeline_mode<synchronous>, transform_indices = @transform_1, window_bounds = array<i64: 32, 128>}, {pipeline_mode = #tpu.pipeline_mode<synchronous>, transform_indices = @transform_2, window_bounds = array<i64: 3, 128, 128>}, {pipeline_mode = #tpu.pipeline_mode<synchronous>, transform_indices = @transform_3, window_bounds = array<i64: 4, 128>}, {transform_indices = @transform_4, window_bounds = array<i64: 8, 4>}]} {
    %c0 = arith.constant 0 : index
    %c0_0 = arith.constant 0 : index
    %0 = vector.load %arg1[%c0, %c0_0] : memref<8x32xf32, #tpu.memory_space<vmem>>, vector<8x32xf32>
    %c0_1 = arith.constant 0 : index
    %c0_2 = arith.constant 0 : index
    %1 = vector.load %arg2[%c0_1, %c0_2] : memref<32x128xf32, #tpu.memory_space<vmem>>, vector<32x128xf32>
    %cst = arith.constant dense<0.000000e+00> : vector<8x128xf32>
    %2 = tpu.matmul %0, %1, %cst {dimension_numbers = #tpu.dot_dimension_numbers<[1], [0], [0], [1], [0, 0, 1, 1], [], []>} : vector<8x32xf32>, vector<32x128xf32>, vector<8x128xf32> -> vector<8x128xf32>
    %c0_3 = arith.constant 0 : index
    %c0_4 = arith.constant 0 : index
    %3 = vector.load %arg4[%c0_3, %c0_4] : memref<4x128xf32, #tpu.memory_space<vmem>>, vector<1x128xf32>
    %4 = vector.broadcast %3 : vector<1x128xf32> to vector<8x128xf32>
    %5 = arith.addf %2, %4 : vector<8x128xf32>
    %cst_5 = arith.constant 0.000000e+00 : f32
    %6 = vector.broadcast %cst_5 : f32 to vector<8x128xf32>
    %7 = arith.maximumf %5, %6 : vector<8x128xf32>
    %c0_6 = arith.constant 0 : index
    %c0_7 = arith.constant 0 : index
    %c0_8 = arith.constant 0 : index
    %8 = vector.load %arg3[%c0_6, %c0_7, %c0_8] : memref<3x128x128xf32, #tpu.memory_space<vmem>>, vector<1x128x128xf32>
    %9 = vector.shape_cast %8 : vector<1x128x128xf32> to vector<128x128xf32>
    %cst_9 = arith.constant dense<0.000000e+00> : vector<8x128xf32>
    %10 = tpu.matmul %7, %9, %cst_9 {dimension_numbers = #tpu.dot_dimension_numbers<[1], [0], [0], [1], [0, 0, 1, 1], [], []>} : vector<8x128xf32>, vector<128x128xf32>, vector<8x128xf32> -> vector<8x128xf32>
    %c1 = arith.constant 1 : index
    %c0_10 = arith.constant 0 : index
    %11 = vector.load %arg4[%c1, %c0_10] : memref<4x128xf32, #tpu.memory_space<vmem>>, vector<1x128xf32>
    %12 = vector.broadcast %11 : vector<1x128xf32> to vector<8x128xf32>
    %13 = arith.addf %10, %12 : vector<8x128xf32>
    %cst_11 = arith.constant 0.000000e+00 : f32
    %14 = vector.broadcast %cst_11 : f32 to vector<8x128xf32>
    %15 = arith.maximumf %13, %14 : vector<8x128xf32>
    %c1_12 = arith.constant 1 : index
    %c0_13 = arith.constant 0 : index
    %c0_14 = arith.constant 0 : index
    %16 = vector.load %arg3[%c1_12, %c0_13, %c0_14] : memref<3x128x128xf32, #tpu.memory_space<vmem>>, vector<1x128x128xf32>
    %17 = vector.shape_cast %16 : vector<1x128x128xf32> to vector<128x128xf32>
    %cst_15 = arith.constant dense<0.000000e+00> : vector<8x128xf32>
    %18 = tpu.matmul %15, %17, %cst_15 {dimension_numbers = #tpu.dot_dimension_numbers<[1], [0], [0], [1], [0, 0, 1, 1], [], []>} : vector<8x128xf32>, vector<128x128xf32>, vector<8x128xf32> -> vector<8x128xf32>
    %c2 = arith.constant 2 : index
    %c0_16 = arith.constant 0 : index
    %19 = vector.load %arg4[%c2, %c0_16] : memref<4x128xf32, #tpu.memory_space<vmem>>, vector<1x128xf32>
    %20 = vector.broadcast %19 : vector<1x128xf32> to vector<8x128xf32>
    %21 = arith.addf %18, %20 : vector<8x128xf32>
    %cst_17 = arith.constant 0.000000e+00 : f32
    %22 = vector.broadcast %cst_17 : f32 to vector<8x128xf32>
    %23 = arith.maximumf %21, %22 : vector<8x128xf32>
    %c2_18 = arith.constant 2 : index
    %c0_19 = arith.constant 0 : index
    %c0_20 = arith.constant 0 : index
    %24 = vector.load %arg3[%c2_18, %c0_19, %c0_20] : memref<3x128x128xf32, #tpu.memory_space<vmem>>, vector<1x128x128xf32>
    %25 = vector.shape_cast %24 : vector<1x128x128xf32> to vector<128x128xf32>
    %cst_21 = arith.constant dense<0.000000e+00> : vector<8x128xf32>
    %26 = tpu.matmul %23, %25, %cst_21 {dimension_numbers = #tpu.dot_dimension_numbers<[1], [0], [0], [1], [0, 0, 1, 1], [], []>} : vector<8x128xf32>, vector<128x128xf32>, vector<8x128xf32> -> vector<8x128xf32>
    %c3 = arith.constant 3 : index
    %c0_22 = arith.constant 0 : index
    %27 = vector.load %arg4[%c3, %c0_22] : memref<4x128xf32, #tpu.memory_space<vmem>>, vector<1x128xf32>
    %28 = vector.broadcast %27 : vector<1x128xf32> to vector<8x128xf32>
    %29 = arith.addf %26, %28 : vector<8x128xf32>
    %30 = vector.extract_strided_slice %29 {offsets = [0, 0], sizes = [8, 4], strides = [1, 1]} : vector<8x128xf32> to vector<8x4xf32>
    %c0_23 = arith.constant 0 : index
    %c0_24 = arith.constant 0 : index
    %31 = vector.load %arg5[%c0_23, %c0_24] : memref<8x4xf32, #tpu.memory_space<vmem>>, vector<8x4xf32>
    tpu.vector_store %arg5[%c0_23, %c0_24], %30 {strides = array<i32>} : memref<8x4xf32, #tpu.memory_space<vmem>>, vector<8x4xf32>,
    return
  }
  func.func @transform_0(%arg0: i32) -> (i32, i32) {
    %c0_i32 = arith.constant 0 : i32
    %c0_i32_0 = arith.constant 0 : i32
    return %arg0, %c0_i32 : i32, i32
  }
  func.func @transform_1(%arg0: i32) -> (i32, i32) {
    %c0_i32 = arith.constant 0 : i32
    %c0_i32_0 = arith.constant 0 : i32
    %c0_i32_1 = arith.constant 0 : i32
    return %c0_i32, %c0_i32_0 : i32, i32
  }
  func.func @transform_2(%arg0: i32) -> (i32, i32, i32) {
    %c0_i32 = arith.constant 0 : i32
    %c0_i32_0 = arith.constant 0 : i32
    %c0_i32_1 = arith.constant 0 : i32
    %c0_i32_2 = arith.constant 0 : i32
    return %c0_i32, %c0_i32_0, %c0_i32_1 : i32, i32, i32
  }
  func.func @transform_3(%arg0: i32) -> (i32, i32) {
    %c0_i32 = arith.constant 0 : i32
    %c0_i32_0 = arith.constant 0 : i32
    %c0_i32_1 = arith.constant 0 : i32
    return %c0_i32, %c0_i32_0 : i32, i32
  }
  func.func @transform_4(%arg0: i32) -> (i32, i32) {
    %c0_i32 = arith.constant 0 : i32
    %c0_i32_0 = arith.constant 0 : i32
    return %arg0, %c0_i32 : i32, i32
  }
}

</mosaic_0001>

<llo_original>
// kernel: tpu_custom_call.1
$region0: #{tpu_custom_call.1}
  #allocation0 [shape = 'u32[]', space=smem, size = 0x4, offset = 0x4, fixed_abs, tag = 'smem constant byte address 0x4 - core index']
  #allocation1 [shape = 'u32[72,128]{1,0:T(1,128)}', space=vmem, size = 0x9000, scoped, tag = 'internal scratch']
  %s0 = inlined_call_operand.hbm [shape: f32[8,32], index: 0, kind: input, shape index: {}]
  %s1 = inlined_call_operand.hbm [shape: f32[32,128], index: 1, kind: input, shape index: {}]
  %s2 = inlined_call_operand.hbm [shape: f32[3,128,128], index: 2, kind: input, shape index: {}]
  %s3 = inlined_call_operand.hbm [shape: f32[4,128], index: 3, kind: input, shape index: {}]
  %s4 = inlined_call_operand.vmem [shape: f32[8,4], index: 4, kind: output, shape index: {}]
  %s5 = sld [smem:[#allocation0]]
  $region42: #{tpu_custom_call.1} parent=0
    _
  %s7 = ssub.s32 1, %s5
  %s8 = scalar_select 0, %s7, %s5
  $region1: #{tpu_custom_call.1} parent=0
    #allocation2 [shape = 'u8[4096]{0}', space=vmem, size = 0x1000, scoped, tag = 'input window, operand 0, single buffered']
    #allocation3 [shape = 's32[1]{0}', space=sflag, size = 0x4, scoped, tag = 'scoped memory for tpu_custom_call.1']
    #allocation4 [shape = 'u8[16384]{0}', space=vmem, size = 0x4000, scoped, tag = 'input window, operand 1, single buffered']
    #allocation5 [shape = 's32[1]{0}', space=sflag, size = 0x4, scoped, tag = 'scoped memory for tpu_custom_call.1']
    #allocation6 [shape = 'u8[196608]{0}', space=vmem, size = 0x30000, scoped, tag = 'input window, operand 2, single buffered']
    #allocation7 [shape = 'u8[2048]{0}', space=vmem, size = 0x800, scoped, tag = 'input window, operand 3, single buffered']
    #allocation8 [shape = 's32[1]{0}', space=sflag, size = 0x4, scoped, tag = 'scoped memory for tpu_custom_call.1']
    %9 = vsyncpa [#allocation3], 0
    %10 = vsyncpa [#allocation5], 0
    %11 = vsyncpa [#allocation8], 0
    // Predicated region
    $region2: #{tpu_custom_call.1} parent=1 // pred_check
      _
    $region3: #{tpu_custom_call.1} parent=1 // pred_check_branch
      %13 = sbr.rel (0) target = $region5
    $region4: #{tpu_custom_call.1} parent=1 // pred_region
      %15 = vsyncadd [#allocation3], 0
      %s17 = sshll.u32 %s0, 4
      %s18 = int_to_ptr.hbm [resolvable:$true] %s17
      %s19 = sshll.u32 [#allocation2], 4
      %s20 = int_to_ptr.vmem [resolvable:$true] %s19
      %22 = dma.hbm_to_vmem [thread:$0]  %s18, 128, %s20, [#allocation3]
    $region5: #{tpu_custom_call.1} parent=1 // pred_fallthru
      _
    // Predicated region
    $region6: #{tpu_custom_call.1} parent=1 // pred_check
      _
    $region7: #{tpu_custom_call.1} parent=1 // pred_check_branch
      %24 = sbr.rel (0) target = $region9
    $region8: #{tpu_custom_call.1} parent=1 // pred_region
      %26 = vsyncadd [#allocation5], 0
      %s27 = sshll.u32 %s1, 4
      %s28 = int_to_ptr.hbm [resolvable:$true] %s27
      %s29 = sshll.u32 [#allocation4], 4
      %s30 = int_to_ptr.vmem [resolvable:$true] %s29
      %35 = dma.hbm_to_vmem [thread:$0]  %s28, 512, %s30, [#allocation5], 128, 128, 8
    $region9: #{tpu_custom_call.1} parent=1 // pred_fallthru
      _
    // Predicated region
    $region10: #{tpu_custom_call.1} parent=1 // pred_check
      _
    $region11: #{tpu_custom_call.1} parent=1 // pred_check_branch
      %37 = sbr.rel (0) target = $region13
    $region12: #{tpu_custom_call.1} parent=1 // pred_region
      %39 = vsyncadd [#allocation5], 0
      %s40 = sshll.u32 %s2, 4
      %s41 = int_to_ptr.hbm [resolvable:$true] %s40
      %s42 = sshll.u32 [#allocation6], 4
      %s43 = int_to_ptr.vmem [resolvable:$true] %s42
      %48 = dma.hbm_to_vmem [thread:$0]  %s41, 6144, %s43, [#allocation5], 128, 128, 8
    $region13: #{tpu_custom_call.1} parent=1 // pred_fallthru
      _
    // Predicated region
    $region14: #{tpu_custom_call.1} parent=1 // pred_check
      _
    $region15: #{tpu_custom_call.1} parent=1 // pred_check_branch
      %50 = sbr.rel (0) target = $region17
    $region16: #{tpu_custom_call.1} parent=1 // pred_region
      %52 = vsyncadd [#allocation8], 0
      %s54 = sshll.u32 %s3, 4
      %s55 = int_to_ptr.hbm [resolvable:$true] %s54
      %s56 = sshll.u32 [#allocation7], 4
      %s57 = int_to_ptr.vmem [resolvable:$true] %s56
      %59 = dma.hbm_to_vmem [thread:$0]  %s55, 64, %s57, [#allocation8]
    $region17: #{tpu_custom_call.1} parent=1 // pred_fallthru
      _
    // Predicated region
    $region18: #{tpu_custom_call.1} parent=1 // pred_check
      _
    $region19: #{tpu_custom_call.1} parent=1 // pred_check_branch
      %61 = sbr.rel (0) target = $region21
    $region20: #{tpu_custom_call.1} parent=1 // pred_region
      %63 = dma.done [#allocation3], 128
    $region21: #{tpu_custom_call.1} parent=1 // pred_fallthru
      _
    // Predicated region
    $region22: #{tpu_custom_call.1} parent=1 // pred_check
      _
    $region23: #{tpu_custom_call.1} parent=1 // pred_check_branch
      %65 = sbr.rel (0) target = $region25
    $region24: #{tpu_custom_call.1} parent=1 // pred_region
      %67 = dma.done [#allocation5], 512
    $region25: #{tpu_custom_call.1} parent=1 // pred_fallthru
      _
    // Predicated region
    $region26: #{tpu_custom_call.1} parent=1 // pred_check
      _
    $region27: #{tpu_custom_call.1} parent=1 // pred_check_branch
      %69 = sbr.rel (0) target = $region29
    $region28: #{tpu_custom_call.1} parent=1 // pred_region
      %71 = dma.done [#allocation5], 6144
    $region29: #{tpu_custom_call.1} parent=1 // pred_fallthru
      _
    // Predicated region
    $region30: #{tpu_custom_call.1} parent=1 // pred_check
      _
    $region31: #{tpu_custom_call.1} parent=1 // pred_check_branch
      %73 = sbr.rel (0) target = $region33
    $region32: #{tpu_custom_call.1} parent=1 // pred_region
      %75 = dma.done [#allocation8], 64
    $region33: #{tpu_custom_call.1} parent=1 // pred_fallthru
      _
    %v76 = vld [vmem:[#allocation2] sm:$0xff]
    %v77 = vld [vmem:[#allocation4] sm:$0xff]
    %v78 = vld [vmem:[#allocation4 + $0x8] sm:$0xff]
    %v79 = vld [vmem:[#allocation4 + $0x10] sm:$0xff]
    %v80 = vld [vmem:[#allocation4 + $0x18] sm:$0xff]
    %v81 = vld [vmem:[#allocation7] sm:$0x1]
    %v82 = vperm.slane %v81, 0
    %vm83 = vcmask 261120
    %v85 = vsel %vm83, %v76, 0
    %87 = vmatpush.msra.mxu0 0.0
    %88 = vmatpush.msra.mxu0 0.0
    %89 = vmatpush.msra.mxu0 0.0
    %90 = vmatpush.msra.mxu0 0.0
    %91 = vmatpush.msra.mxu0 0.0
    %92 = vmatpush.msra.mxu0 0.0
    %93 = vmatpush.msra.mxu0 0.0
    %94 = vmatpush.msra.mxu0 0.0
    %95 = vmatpush.msra.mxu0 0.0
    %96 = vmatpush.msra.mxu0 0.0
    %97 = vmatpush.msra.mxu0 0.0
    %98 = vmatpush.msra.mxu0 0.0
    %99 = vmatpush.msra.mxu0 %v80
    %100 = vmatpush.msra.mxu0 %v79
    %101 = vmatpush.msra.mxu0 %v78
    %102 = vmatpush.msra.mxu0 %v77
    %103 = vmatmul.f32.gmra.mxu0 %v85
    %v104 = vpop.f32.mrf.mxu0
    %v105 = vadd.f32 %v82, %v104
    %106 = vdwg.mxu0
    %v107 = vmax.f32 %v105, 0.0
    %v108 = vld [vmem:[#allocation6] sm:$0xff]
    %v109 = vld [vmem:[#allocation6 + $0x8] sm:$0xff]
    %v110 = vld [vmem:[#allocation6 + $0x10] sm:$0xff]
    %v111 = vld [vmem:[#allocation6 + $0x18] sm:$0xff]
    %v112 = vld [vmem:[#allocation6 + $0x20] sm:$0xff]
    %v113 = vld [vmem:[#allocation6 + $0x28] sm:$0xff]
    %v114 = vld [vmem:[#allocation6 + $0x30] sm:$0xff]
    %v115 = vld [vmem:[#allocation6 + $0x38] sm:$0xff]
    %v116 = vld [vmem:[#allocation6 + $0x40] sm:$0xff]
    %v117 = vld [vmem:[#allocation6 + $0x48] sm:$0xff]
    %v118 = vld [vmem:[#allocation6 + $0x50] sm:$0xff]
    %v119 = vld [vmem:[#allocation6 + $0x58] sm:$0xff]
    %v120 = vld [vmem:[#allocation6 + $0x60] sm:$0xff]
    %v121 = vld [vmem:[#allocation6 + $0x68] sm:$0xff]
    %v122 = vld [vmem:[#allocation6 + $0x70] sm:$0xff]
    %v123 = vld [vmem:[#allocation6 + $0x78] sm:$0xff]
    %v124 = vld [vmem:[#allocation7 + $0x1] sm:$0x1]
    %v125 = vperm.slane %v124, 0
    %126 = vmatpush.msra.mxu0 %v123
    %127 = vmatpush.msra.mxu0 %v122
    %128 = vmatpush.msra.mxu0 %v121
    %129 = vmatpush.msra.mxu0 %v120
    %130 = vmatpush.msra.mxu0 %v119
    %131 = vmatpush.msra.mxu0 %v118
    %132 = vmatpush.msra.mxu0 %v117
    %133 = vmatpush.msra.mxu0 %v116
    %134 = vmatpush.msra.mxu0 %v115
    %135 = vmatpush.msra.mxu0 %v114
    %136 = vmatpush.msra.mxu0 %v113
    %137 = vmatpush.msra.mxu0 %v112
    %138 = vmatpush.msra.mxu0 %v111
    %139 = vmatpush.msra.mxu0 %v110
    %140 = vmatpush.msra.mxu0 %v109
    %141 = vmatpush.msra.mxu0 %v108
    %142 = vmatmul.f32.gmra.mxu0 %v107
    %v143 = vpop.f32.mrf.mxu0
    %v144 = vadd.f32 %v125, %v143
    %145 = vdwg.mxu0
    %v146 = vmax.f32 %v144, 0.0
    %s147 = scalar_lea.vmem [#allocation6], 128
    %v148 = vld [vmem:[%s147] sm:$0xff]
    %v149 = vld [vmem:[%s147 + $0x8] sm:$0xff]
    %v150 = vld [vmem:[%s147 + $0x10] sm:$0xff]
    %v151 = vld [vmem:[%s147 + $0x18] sm:$0xff]
    %v152 = vld [vmem:[%s147 + $0x20] sm:$0xff]
    %v153 = vld [vmem:[%s147 + $0x28] sm:$0xff]
    %v154 = vld [vmem:[%s147 + $0x30] sm:$0xff]
    %v155 = vld [vmem:[%s147 + $0x38] sm:$0xff]
    %v156 = vld [vmem:[%s147 + $0x40] sm:$0xff]
    %v157 = vld [vmem:[%s147 + $0x48] sm:$0xff]
    %v158 = vld [vmem:[%s147 + $0x50] sm:$0xff]
    %v159 = vld [vmem:[%s147 + $0x58] sm:$0xff]
    %v160 = vld [vmem:[%s147 + $0x60] sm:$0xff]
    %v161 = vld [vmem:[%s147 + $0x68] sm:$0xff]
    %v162 = vld [vmem:[%s147 + $0x70] sm:$0xff]
    %v163 = vld [vmem:[%s147 + $0x78] sm:$0xff]
    %v164 = vld [vmem:[#allocation7 + $0x2] sm:$0x1]
    %v165 = vperm.slane %v164, 0
    %166 = vmatpush.msra.mxu0 %v163
    %167 = vmatpush.msra.mxu0 %v162
    %168 = vmatpush.msra.mxu0 %v161
    %169 = vmatpush.msra.mxu0 %v160
    %170 = vmatpush.msra.mxu0 %v159
    %171 = vmatpush.msra.mxu0 %v158
    %172 = vmatpush.msra.mxu0 %v157
    %173 = vmatpush.msra.mxu0 %v156
    %174 = vmatpush.msra.mxu0 %v155
    %175 = vmatpush.msra.mxu0 %v154
    %176 = vmatpush.msra.mxu0 %v153
    %177 = vmatpush.msra.mxu0 %v152
    %178 = vmatpush.msra.mxu0 %v151
    %179 = vmatpush.msra.mxu0 %v150
    %180 = vmatpush.msra.mxu0 %v149
    %181 = vmatpush.msra.mxu0 %v148
    %182 = vmatmul.f32.gmra.mxu0 %v146
    %v183 = vpop.f32.mrf.mxu0
    %v184 = vadd.f32 %v165, %v183
    %185 = vdwg.mxu0
    %v186 = vmax.f32 %v184, 0.0
    %s187 = scalar_lea.vmem [#allocation6], 256
    %v188 = vld [vmem:[%s187] sm:$0xff]
    %v189 = vld [vmem:[%s187 + $0x8] sm:$0xff]
    %v190 = vld [vmem:[%s187 + $0x10] sm:$0xff]
    %v191 = vld [vmem:[%s187 + $0x18] sm:$0xff]
    %v192 = vld [vmem:[%s187 + $0x20] sm:$0xff]
    %v193 = vld [vmem:[%s187 + $0x28] sm:$0xff]
    %v194 = vld [vmem:[%s187 + $0x30] sm:$0xff]
    %v195 = vld [vmem:[%s187 + $0x38] sm:$0xff]
    %v196 = vld [vmem:[%s187 + $0x40] sm:$0xff]
    %v197 = vld [vmem:[%s187 + $0x48] sm:$0xff]
    %v198 = vld [vmem:[%s187 + $0x50] sm:$0xff]
    %v199 = vld [vmem:[%s187 + $0x58] sm:$0xff]
    %v200 = vld [vmem:[%s187 + $0x60] sm:$0xff]
    %v201 = vld [vmem:[%s187 + $0x68] sm:$0xff]
    %v202 = vld [vmem:[%s187 + $0x70] sm:$0xff]
    %v203 = vld [vmem:[%s187 + $0x78] sm:$0xff]
    %v204 = vld [vmem:[#allocation7 + $0x3] sm:$0x1]
    %v205 = vperm.slane %v204, 0
    %206 = vmatpush.msra.mxu0 %v203
    %207 = vmatpush.msra.mxu0 %v202
    %208 = vmatpush.msra.mxu0 %v201
    %209 = vmatpush.msra.mxu0 %v200
    %210 = vmatpush.msra.mxu0 %v199
    %211 = vmatpush.msra.mxu0 %v198
    %212 = vmatpush.msra.mxu0 %v197
    %213 = vmatpush.msra.mxu0 %v196
    %214 = vmatpush.msra.mxu0 %v195
    %215 = vmatpush.msra.mxu0 %v194
    %216 = vmatpush.msra.mxu0 %v193
    %217 = vmatpush.msra.mxu0 %v192
    %218 = vmatpush.msra.mxu0 %v191
    %219 = vmatpush.msra.mxu0 %v190
    %220 = vmatpush.msra.mxu0 %v189
    %221 = vmatpush.msra.mxu0 %v188
    %222 = vmatmul.f32.gmra.mxu0 %v186
    %v223 = vpop.f32.mrf.mxu0
    %v224 = vadd.f32 %v205, %v223
    %225 = vdwg.mxu0
    %vm226 = vcmask 31744
    %227 = vst.msk [vmem:[%s4] sm:$0xff] %vm226, %v224
    // Predicated region
    $region34: #{tpu_custom_call.1} parent=1 // pred_check
      _
    $region35: #{tpu_custom_call.1} parent=1 // pred_check_branch
      %229 = sbr.rel (0) target = $region37
    $region36: #{tpu_custom_call.1} parent=1 // pred_region
      _
    $region37: #{tpu_custom_call.1} parent=1 // pred_fallthru
      _
    // Predicated region
    $region38: #{tpu_custom_call.1} parent=1 // pred_check
      _
    $region39: #{tpu_custom_call.1} parent=1 // pred_check_branch
      %231 = sbr.rel (0) target = $region41
    $region40: #{tpu_custom_call.1} parent=1 // pred_region
      _
    $region41: #{tpu_custom_call.1} parent=1 // pred_fallthru
      _
    %232 = vsyncpa [#allocation3], 1
    %233 = vsyncpa [#allocation5], 1
    %234 = vsyncpa [#allocation8], 1

</llo_original>
